<compile_context>
chip_gen: v6e
topology: v6e:2x2x1
jax: 0.10.0
libtpu: 0.0.40
codegen_flags: <defaults>
</compile_context>

<pallas_src>
import jax
import jax.numpy as jnp
from jax.experimental import pallas as pl
from jax.experimental.pallas import tpu as pltpu

HIDDEN = 64


def dqn_kernel(x_ref,
               w0_ref, b0_ref,
               w1_ref, b1_ref,
               w2_ref, b2_ref,
               w3_ref, b3_ref,
               out_ref):
    # x tile: (TB, input_dim) f32 -> cast to bf16 on the VPU right before the
    # first MXU push.  Weights bf16 (VMEM-resident across grid steps).
    # Biases f32, added to the f32 MXU accumulator.  ReLU in bf16.
    x = x_ref[...].astype(jnp.bfloat16)
    h = jnp.dot(x, w0_ref[...], preferred_element_type=jnp.float32) + b0_ref[...]
    h = jnp.maximum(h.astype(jnp.bfloat16), 0)
    h = jnp.dot(h, w1_ref[...], preferred_element_type=jnp.float32) + b1_ref[...]
    h = jnp.maximum(h.astype(jnp.bfloat16), 0)
    h = jnp.dot(h, w2_ref[...], preferred_element_type=jnp.float32) + b2_ref[...]
    h = jnp.maximum(h.astype(jnp.bfloat16), 0)
    o = jnp.dot(h, w3_ref[...], preferred_element_type=jnp.float32) + b3_ref[...]
    out_ref[...] = o.astype(out_ref.dtype)


def _round_up(n, m):
    return ((n + m - 1) // m) * m


def dqn_forward(x, params, *, block_b=2048):
    """x: (B, input_dim) f32. params: list of (W, b) with W as (in, out), b as (1, out)."""
    (w0, b0), (w1, b1), (w2, b2), (w3, b3) = params
    B, input_dim = x.shape
    out_dim = w3.shape[1]

    # Batch tile: at most block_b rows, sublane-aligned (multiple of 8), and
    # sized so that whenever B would need >1 tile the grid has >=2 steps
    # (lets the "parallel" axis shard across both TensorCores on v7x).
    tb = max(8, min(block_b, _round_up(pl.cdiv(B, 2), 8)))
    tb = min(tb, _round_up(B, 8))          # never bigger than one (padded) tile
    grid = (pl.cdiv(B, tb),)               # ragged last tile handled by Pallas masking

    # Weights streamed/resident in bf16; biases stay f32 (added to f32 accumulator).
    wts = [w.astype(jnp.bfloat16) for w in (w0, w1, w2, w3)]
    bss = [b.astype(jnp.float32) for b in (b0, b1, b2, b3)]

    def batch_map(i):
        return (i, 0)

    def const_map(i):
        return (0, 0)

    in_specs = [pl.BlockSpec((tb, input_dim), batch_map)]
    for w, b in zip(wts, bss):
        in_specs.append(pl.BlockSpec(w.shape, const_map))   # weights resident in VMEM
        in_specs.append(pl.BlockSpec(b.shape, const_map))   # biases resident in VMEM
    out_specs = pl.BlockSpec((tb, out_dim), batch_map)

    flops = 2 * B * (input_dim * HIDDEN + HIDDEN * HIDDEN * 2 + HIDDEN * out_dim)
    bytes_accessed = (B * input_dim * 4                       # x streamed as f32
                      + sum(int(w.size) * 2 for w in wts)
                      + sum(int(b.size) * 4 for b in bss)
                      + B * out_dim * 4)

    out = pl.pallas_call(
        dqn_kernel,
        out_shape=jax.ShapeDtypeStruct((B, out_dim), jnp.float32),
        grid=grid,
        in_specs=in_specs,
        out_specs=out_specs,
        compiler_params=pltpu.CompilerParams(
            dimension_semantics=("parallel",),   # batch tiles shard across TCs (v7x)
        ),
        cost_estimate=pl.CostEstimate(
            flops=int(flops), transcendentals=0, bytes_accessed=int(bytes_accessed)),
    )(x, wts[0], bss[0], wts[1], bss[1], wts[2], bss[2], wts[3], bss[3])

    return out


def init_params(key, input_dim, output_dim, hidden=HIDDEN):
    """Deterministic init mimicking nn.Linear (uniform +/- 1/sqrt(fan_in))."""
    dims = [(input_dim, hidden), (hidden, hidden), (hidden, hidden), (hidden, output_dim)]
    params = []
    for i, (fan_in, fan_out) in enumerate(dims):
        kw, kb = jax.random.split(jax.random.fold_in(key, i))
        bound = 1.0 / jnp.sqrt(jnp.float32(fan_in))
        # Stored as (in, out): equivalent to torch weight (out, in) transposed.
        w = jax.random.uniform(kw, (fan_in, fan_out), jnp.float32, -bound, bound)
        b = jax.random.uniform(kb, (1, fan_out), jnp.float32, -bound, bound)
        params.append((w, b))
    return params


def dqn_reference(x, params):
    """Pure-JAX reference with the same bf16-stream / f32-accumulate math."""
    h = x.astype(jnp.bfloat16)
    for i, (w, b) in enumerate(params):
        h = jnp.dot(h, w.astype(jnp.bfloat16),
                    preferred_element_type=jnp.float32) + b.astype(jnp.float32)
        if i < len(params) - 1:
            h = jnp.maximum(h.astype(jnp.bfloat16), 0)
    return h


if __name__ == "__main__":
    key = jax.random.PRNGKey(0)
    input_dim, output_dim = 16, 4
    kx, kp = jax.random.split(key)
    params = init_params(kp, input_dim, output_dim)

    # Small shape consistent with the module (single-tile path).
    batch = 8
    x = jax.random.normal(kx, (batch, input_dim), jnp.float32)
    out = jax.block_until_ready(dqn_forward(x, params))
    ref = dqn_reference(x, params)
    assert out.shape == (batch, output_dim)
    assert jnp.allclose(out, ref, atol=2e-2, rtol=2e-2), "mismatch vs reference (B=8)"

    # Exercise the multi-step grid + ragged-last-tile (masked write) path:
    # B=600 -> tb=304, grid=(2,), last tile has 296 valid rows.
    batch2 = 600
    x2 = jax.random.normal(jax.random.fold_in(kx, 1), (batch2, input_dim), jnp.float32)
    out2 = jax.block_until_ready(dqn_forward(x2, params))
    ref2 = dqn_reference(x2, params)
    assert out2.shape == (batch2, output_dim)
    assert jnp.allclose(out2, ref2, atol=2e-2, rtol=2e-2), "mismatch vs reference (B=600)"

    print("KERNEL_OK")
</pallas_src>

<mosaic_0001>
module attributes {stable_mosaic.version = 11 : i64} {
  func.func @dqn_kernel(%arg0: i32, %arg1: memref<8x16xf32, #tpu.memory_space<vmem>>, %arg2: memref<16x64xbf16, #tpu.memory_space<vmem>>, %arg3: memref<1x64xf32, #tpu.memory_space<vmem>>, %arg4: memref<64x64xbf16, #tpu.memory_space<vmem>>, %arg5: memref<1x64xf32, #tpu.memory_space<vmem>>, %arg6: memref<64x64xbf16, #tpu.memory_space<vmem>>, %arg7: memref<1x64xf32, #tpu.memory_space<vmem>>, %arg8: memref<64x4xbf16, #tpu.memory_space<vmem>>, %arg9: memref<1x4xf32, #tpu.memory_space<vmem>>, %arg10: memref<8x4xf32, #tpu.memory_space<vmem>>) attributes {dimension_semantics = [#tpu.dimension_semantics<parallel>], iteration_bounds = array<i64: 1>, scalar_prefetch = 0 : i64, scratch_operands = 0 : i64, tpu.core_type = #tpu.core_type<tc>, window_params = [{transform_indices = @transform_0, window_bounds = array<i64: 8, 16>}, {pipeline_mode = #tpu.pipeline_mode<synchronous>, transform_indices = @transform_1, window_bounds = array<i64: 16, 64>}, {pipeline_mode = #tpu.pipeline_mode<synchronous>, transform_indices = @transform_2, window_bounds = array<i64: 1, 64>}, {pipeline_mode = #tpu.pipeline_mode<synchronous>, transform_indices = @transform_3, window_bounds = array<i64: 64, 64>}, {pipeline_mode = #tpu.pipeline_mode<synchronous>, transform_indices = @transform_4, window_bounds = array<i64: 1, 64>}, {pipeline_mode = #tpu.pipeline_mode<synchronous>, transform_indices = @transform_5, window_bounds = array<i64: 64, 64>}, {pipeline_mode = #tpu.pipeline_mode<synchronous>, transform_indices = @transform_6, window_bounds = array<i64: 1, 64>}, {pipeline_mode = #tpu.pipeline_mode<synchronous>, transform_indices = @transform_7, window_bounds = array<i64: 64, 4>}, {pipeline_mode = #tpu.pipeline_mode<synchronous>, transform_indices = @transform_8, window_bounds = array<i64: 1, 4>}, {transform_indices = @transform_9, window_bounds = array<i64: 8, 4>}]} {
    %c0 = arith.constant 0 : index
    %c0_0 = arith.constant 0 : index
    %0 = vector.load %arg1[%c0, %c0_0] : memref<8x16xf32, #tpu.memory_space<vmem>>, vector<8x16xf32>
    %1 = arith.truncf %0 : vector<8x16xf32> to vector<8x16xbf16>
    %c0_1 = arith.constant 0 : index
    %c0_2 = arith.constant 0 : index
    %2 = vector.load %arg2[%c0_1, %c0_2] : memref<16x64xbf16, #tpu.memory_space<vmem>>, vector<16x64xbf16>
    %cst = arith.constant dense<0.000000e+00> : vector<8x64xf32>
    %3 = tpu.matmul %1, %2, %cst {dimension_numbers = #tpu.dot_dimension_numbers<[1], [0], [0], [1], [0, 0, 1, 1], [], []>} : vector<8x16xbf16>, vector<16x64xbf16>, vector<8x64xf32> -> vector<8x64xf32>
    %c0_3 = arith.constant 0 : index
    %c0_4 = arith.constant 0 : index
    %4 = vector.load %arg3[%c0_3, %c0_4] : memref<1x64xf32, #tpu.memory_space<vmem>>, vector<1x64xf32>
    %5 = vector.broadcast %4 : vector<1x64xf32> to vector<8x64xf32>
    %6 = arith.addf %3, %5 : vector<8x64xf32>
    %7 = arith.truncf %6 : vector<8x64xf32> to vector<8x64xbf16>
    %cst_5 = arith.constant 0.000000e+00 : bf16
    %8 = vector.broadcast %cst_5 : bf16 to vector<8x64xbf16>
    %9 = arith.maximumf %7, %8 : vector<8x64xbf16>
    %c0_6 = arith.constant 0 : index
    %c0_7 = arith.constant 0 : index
    %10 = vector.load %arg4[%c0_6, %c0_7] : memref<64x64xbf16, #tpu.memory_space<vmem>>, vector<64x64xbf16>
    %cst_8 = arith.constant dense<0.000000e+00> : vector<8x64xf32>
    %11 = tpu.matmul %9, %10, %cst_8 {dimension_numbers = #tpu.dot_dimension_numbers<[1], [0], [0], [1], [0, 0, 1, 1], [], []>} : vector<8x64xbf16>, vector<64x64xbf16>, vector<8x64xf32> -> vector<8x64xf32>
    %c0_9 = arith.constant 0 : index
    %c0_10 = arith.constant 0 : index
    %12 = vector.load %arg5[%c0_9, %c0_10] : memref<1x64xf32, #tpu.memory_space<vmem>>, vector<1x64xf32>
    %13 = vector.broadcast %12 : vector<1x64xf32> to vector<8x64xf32>
    %14 = arith.addf %11, %13 : vector<8x64xf32>
    %15 = arith.truncf %14 : vector<8x64xf32> to vector<8x64xbf16>
    %cst_11 = arith.constant 0.000000e+00 : bf16
    %16 = vector.broadcast %cst_11 : bf16 to vector<8x64xbf16>
    %17 = arith.maximumf %15, %16 : vector<8x64xbf16>
    %c0_12 = arith.constant 0 : index
    %c0_13 = arith.constant 0 : index
    %18 = vector.load %arg6[%c0_12, %c0_13] : memref<64x64xbf16, #tpu.memory_space<vmem>>, vector<64x64xbf16>
    %cst_14 = arith.constant dense<0.000000e+00> : vector<8x64xf32>
    %19 = tpu.matmul %17, %18, %cst_14 {dimension_numbers = #tpu.dot_dimension_numbers<[1], [0], [0], [1], [0, 0, 1, 1], [], []>} : vector<8x64xbf16>, vector<64x64xbf16>, vector<8x64xf32> -> vector<8x64xf32>
    %c0_15 = arith.constant 0 : index
    %c0_16 = arith.constant 0 : index
    %20 = vector.load %arg7[%c0_15, %c0_16] : memref<1x64xf32, #tpu.memory_space<vmem>>, vector<1x64xf32>
    %21 = vector.broadcast %20 : vector<1x64xf32> to vector<8x64xf32>
    %22 = arith.addf %19, %21 : vector<8x64xf32>
    %23 = arith.truncf %22 : vector<8x64xf32> to vector<8x64xbf16>
    %cst_17 = arith.constant 0.000000e+00 : bf16
    %24 = vector.broadcast %cst_17 : bf16 to vector<8x64xbf16>
    %25 = arith.maximumf %23, %24 : vector<8x64xbf16>
    %c0_18 = arith.constant 0 : index
    %c0_19 = arith.constant 0 : index
    %26 = vector.load %arg8[%c0_18, %c0_19] : memref<64x4xbf16, #tpu.memory_space<vmem>>, vector<64x4xbf16>
    %cst_20 = arith.constant dense<0.000000e+00> : vector<8x4xf32>
    %27 = tpu.matmul %25, %26, %cst_20 {dimension_numbers = #tpu.dot_dimension_numbers<[1], [0], [0], [1], [0, 0, 1, 1], [], []>} : vector<8x64xbf16>, vector<64x4xbf16>, vector<8x4xf32> -> vector<8x4xf32>
    %c0_21 = arith.constant 0 : index
    %c0_22 = arith.constant 0 : index
    %28 = vector.load %arg9[%c0_21, %c0_22] : memref<1x4xf32, #tpu.memory_space<vmem>>, vector<1x4xf32>
    %29 = vector.broadcast %28 : vector<1x4xf32> to vector<8x4xf32>
    %30 = arith.addf %27, %29 : vector<8x4xf32>
    %c0_23 = arith.constant 0 : index
    %c0_24 = arith.constant 0 : index
    %31 = vector.load %arg10[%c0_23, %c0_24] : memref<8x4xf32, #tpu.memory_space<vmem>>, vector<8x4xf32>
    tpu.vector_store %arg10[%c0_23, %c0_24], %30 {strides = array<i32>} : memref<8x4xf32, #tpu.memory_space<vmem>>, vector<8x4xf32>,
    return
  }
  func.func @transform_0(%arg0: i32) -> (i32, i32) {
    %c0_i32 = arith.constant 0 : i32
    %c0_i32_0 = arith.constant 0 : i32
    return %arg0, %c0_i32 : i32, i32
  }
  func.func @transform_1(%arg0: i32) -> (i32, i32) {
    %c0_i32 = arith.constant 0 : i32
    %c0_i32_0 = arith.constant 0 : i32
    %c0_i32_1 = arith.constant 0 : i32
    return %c0_i32, %c0_i32_0 : i32, i32
  }
  func.func @transform_2(%arg0: i32) -> (i32, i32) {
    %c0_i32 = arith.constant 0 : i32
    %c0_i32_0 = arith.constant 0 : i32
    %c0_i32_1 = arith.constant 0 : i32
    return %c0_i32, %c0_i32_0 : i32, i32
  }
  func.func @transform_3(%arg0: i32) -> (i32, i32) {
    %c0_i32 = arith.constant 0 : i32
    %c0_i32_0 = arith.constant 0 : i32
    %c0_i32_1 = arith.constant 0 : i32
    return %c0_i32, %c0_i32_0 : i32, i32
  }
  func.func @transform_4(%arg0: i32) -> (i32, i32) {
    %c0_i32 = arith.constant 0 : i32
    %c0_i32_0 = arith.constant 0 : i32
    %c0_i32_1 = arith.constant 0 : i32
    return %c0_i32, %c0_i32_0 : i32, i32
  }
  func.func @transform_5(%arg0: i32) -> (i32, i32) {
    %c0_i32 = arith.constant 0 : i32
    %c0_i32_0 = arith.constant 0 : i32
    %c0_i32_1 = arith.constant 0 : i32
    return %c0_i32, %c0_i32_0 : i32, i32
  }
  func.func @transform_6(%arg0: i32) -> (i32, i32) {
    %c0_i32 = arith.constant 0 : i32
    %c0_i32_0 = arith.constant 0 : i32
    %c0_i32_1 = arith.constant 0 : i32
    return %c0_i32, %c0_i32_0 : i32, i32
  }
  func.func @transform_7(%arg0: i32) -> (i32, i32) {
    %c0_i32 = arith.constant 0 : i32
    %c0_i32_0 = arith.constant 0 : i32
    %c0_i32_1 = arith.constant 0 : i32
    return %c0_i32, %c0_i32_0 : i32, i32
  }
  func.func @transform_8(%arg0: i32) -> (i32, i32) {
    %c0_i32 = arith.constant 0 : i32
    %c0_i32_0 = arith.constant 0 : i32
    %c0_i32_1 = arith.constant 0 : i32
    return %c0_i32, %c0_i32_0 : i32, i32
  }
  func.func @transform_9(%arg0: i32) -> (i32, i32) {
    %c0_i32 = arith.constant 0 : i32
    %c0_i32_0 = arith.constant 0 : i32
    return %arg0, %c0_i32 : i32, i32
  }
}

</mosaic_0001>

<llo_original>
// kernel: tpu_custom_call.1
$region0: #{tpu_custom_call.1}
  #allocation0 [shape = 'u32[]', space=smem, size = 0x4, offset = 0x4, fixed_abs, tag = 'smem constant byte address 0x4 - core index']
  #allocation1 [shape = 'u32[144,128]{1,0:T(1,128)}', space=vmem, size = 0x12000, scoped, tag = 'internal scratch']
  %s0 = inlined_call_operand.hbm [shape: f32[8,16], index: 0, kind: input, shape index: {}]
  %s1 = inlined_call_operand.hbm [shape: bf16[16,64], index: 1, kind: input, shape index: {}]
  %s2 = inlined_call_operand.vmem [shape: f32[1,64], index: 2, kind: input, shape index: {}]
  %s3 = inlined_call_operand.vmem [shape: bf16[64,64], index: 3, kind: input, shape index: {}]
  %s4 = inlined_call_operand.vmem [shape: f32[1,64], index: 4, kind: input, shape index: {}]
  %s5 = inlined_call_operand.hbm [shape: bf16[64,64], index: 5, kind: input, shape index: {}]
  %s6 = inlined_call_operand.vmem [shape: f32[1,64], index: 6, kind: input, shape index: {}]
  %s7 = inlined_call_operand.vmem [shape: bf16[64,4], index: 7, kind: input, shape index: {}]
  %s8 = inlined_call_operand.vmem [shape: f32[1,4], index: 8, kind: input, shape index: {}]
  %s9 = inlined_call_operand.vmem [shape: f32[8,4], index: 9, kind: output, shape index: {}]
  %s10 = sld [smem:[#allocation0]]
  $region58: #{tpu_custom_call.1} parent=0
    _
  %s12 = ssub.s32 1, %s10
  %s13 = scalar_select 0, %s12, %s10
  $region1: #{tpu_custom_call.1} parent=0
    #allocation2 [shape = 'u8[4096]{0}', space=vmem, size = 0x1000, scoped, tag = 'input window, operand 0, single buffered']
    #allocation3 [shape = 's32[1]{0}', space=sflag, size = 0x4, scoped, tag = 'scoped memory for tpu_custom_call.1']
    #allocation4 [shape = 'u8[4096]{0}', space=vmem, size = 0x1000, scoped, tag = 'input window, operand 1, single buffered']
    #allocation5 [shape = 's32[1]{0}', space=sflag, size = 0x4, scoped, tag = 'scoped memory for tpu_custom_call.1']
    #allocation6 [shape = 'u8[16384]{0}', space=vmem, size = 0x4000, scoped, tag = 'input window, operand 5, single buffered']
    %14 = vsyncpa [#allocation3], 0
    %15 = vsyncpa [#allocation5], 0
    // Predicated region
    $region2: #{tpu_custom_call.1} parent=1 // pred_check
      _
    $region3: #{tpu_custom_call.1} parent=1 // pred_check_branch
      %17 = sbr.rel (0) target = $region5
    $region4: #{tpu_custom_call.1} parent=1 // pred_region
      %s19 = ssub.s32 128, 128
      %20 = vsyncadd [#allocation3], %s19
      %s22 = sshll.u32 [#allocation2], 4
      %s23 = int_to_ptr.vmem [resolvable:$true] %s22
      %25 = dma.hbm_to_vmem [thread:$0]  %s0, 128, %s23, [#allocation3]
    $region5: #{tpu_custom_call.1} parent=1 // pred_fallthru
      _
    // Predicated region
    $region6: #{tpu_custom_call.1} parent=1 // pred_check
      _
    $region7: #{tpu_custom_call.1} parent=1 // pred_check_branch
      %27 = sbr.rel (0) target = $region9
    $region8: #{tpu_custom_call.1} parent=1 // pred_region
      %s29 = ssub.s32 128, 128
      %30 = vsyncadd [#allocation5], %s29
      %s31 = sshll.u32 [#allocation4], 4
      %s32 = int_to_ptr.vmem [resolvable:$true] %s31
      %37 = dma.hbm_to_vmem [thread:$0]  %s1, 128, %s32, [#allocation5], 64, 64, 4
    $region9: #{tpu_custom_call.1} parent=1 // pred_fallthru
      _
    // Predicated region
    $region10: #{tpu_custom_call.1} parent=1 // pred_check
      _
    $region11: #{tpu_custom_call.1} parent=1 // pred_check_branch
      %39 = sbr.rel (0) target = $region13
    $region12: #{tpu_custom_call.1} parent=1 // pred_region
      _
    $region13: #{tpu_custom_call.1} parent=1 // pred_fallthru
      _
    // Predicated region
    $region14: #{tpu_custom_call.1} parent=1 // pred_check
      _
    $region15: #{tpu_custom_call.1} parent=1 // pred_check_branch
      %41 = sbr.rel (0) target = $region17
    $region16: #{tpu_custom_call.1} parent=1 // pred_region
      _
    $region17: #{tpu_custom_call.1} parent=1 // pred_fallthru
      _
    // Predicated region
    $region18: #{tpu_custom_call.1} parent=1 // pred_check
      _
    $region19: #{tpu_custom_call.1} parent=1 // pred_check_branch
      %43 = sbr.rel (0) target = $region21
    $region20: #{tpu_custom_call.1} parent=1 // pred_region
      _
    $region21: #{tpu_custom_call.1} parent=1 // pred_fallthru
      _
    // Predicated region
    $region22: #{tpu_custom_call.1} parent=1 // pred_check
      _
    $region23: #{tpu_custom_call.1} parent=1 // pred_check_branch
      %45 = sbr.rel (0) target = $region25
    $region24: #{tpu_custom_call.1} parent=1 // pred_region
      %s47 = ssub.s32 512, 512
      %48 = vsyncadd [#allocation5], %s47
      %s49 = sshll.u32 [#allocation6], 4
      %s50 = int_to_ptr.vmem [resolvable:$true] %s49
      %55 = dma.hbm_to_vmem [thread:$0]  %s5, 512, %s50, [#allocation5], 64, 64, 4
    $region25: #{tpu_custom_call.1} parent=1 // pred_fallthru
      _
    // Predicated region
    $region26: #{tpu_custom_call.1} parent=1 // pred_check
      _
    $region27: #{tpu_custom_call.1} parent=1 // pred_check_branch
      %57 = sbr.rel (0) target = $region29
    $region28: #{tpu_custom_call.1} parent=1 // pred_region
      _
    $region29: #{tpu_custom_call.1} parent=1 // pred_fallthru
      _
    // Predicated region
    $region30: #{tpu_custom_call.1} parent=1 // pred_check
      _
    $region31: #{tpu_custom_call.1} parent=1 // pred_check_branch
      %59 = sbr.rel (0) target = $region33
    $region32: #{tpu_custom_call.1} parent=1 // pred_region
      _
    $region33: #{tpu_custom_call.1} parent=1 // pred_fallthru
      _
    // Predicated region
    $region34: #{tpu_custom_call.1} parent=1 // pred_check
      _
    $region35: #{tpu_custom_call.1} parent=1 // pred_check_branch
      %61 = sbr.rel (0) target = $region37
    $region36: #{tpu_custom_call.1} parent=1 // pred_region
      _
    $region37: #{tpu_custom_call.1} parent=1 // pred_fallthru
      _
    // Predicated region
    $region38: #{tpu_custom_call.1} parent=1 // pred_check
      _
    $region39: #{tpu_custom_call.1} parent=1 // pred_check_branch
      %63 = sbr.rel (0) target = $region41
    $region40: #{tpu_custom_call.1} parent=1 // pred_region
      %64 = dma.done [#allocation3], 128
    $region41: #{tpu_custom_call.1} parent=1 // pred_fallthru
      _
    // Predicated region
    $region42: #{tpu_custom_call.1} parent=1 // pred_check
      _
    $region43: #{tpu_custom_call.1} parent=1 // pred_check_branch
      %66 = sbr.rel (0) target = $region45
    $region44: #{tpu_custom_call.1} parent=1 // pred_region
      %67 = dma.done [#allocation5], 128
    $region45: #{tpu_custom_call.1} parent=1 // pred_fallthru
      _
    // Predicated region
    $region46: #{tpu_custom_call.1} parent=1 // pred_check
      _
    $region47: #{tpu_custom_call.1} parent=1 // pred_check_branch
      %69 = sbr.rel (0) target = $region49
    $region48: #{tpu_custom_call.1} parent=1 // pred_region
      %70 = dma.done [#allocation5], 512
    $region49: #{tpu_custom_call.1} parent=1 // pred_fallthru
      _
    %v72 = vld [vmem:[#allocation2] sm:$0xff]
    %v73 = vpack.c.bf16 %v72, %v72
    %v74 = vld [vmem:[#allocation4] sm:$0xf]
    %v75 = vld [vmem:[#allocation4 + $0x4] sm:$0xf]
    %v76 = vld [vmem:[%s2] sm:$0x1]
    %v78 = vlaneseq
    %v79 = vshrl.u32 %v78, 7
    %v80 = vsub.s32 0, %v79
    %v81 = vrot.slane %v76, %v80
    %v85 = vunpack.c.l.b16 %v74
    %v86 = vunpack.c.l.b16 %v75
    %v87 = vpack.c.b16 %v86, %v85
    %vm89 = vcmask 130048
    %v91 = vsel %vm89, %v73, 0
    %93 = vmatprep.subr.bf16.mxu0 0
    %94 = vmatpush1.bf16.msra.mxu0 0
    %95 = vmatprep.subr.bf16.mxu0 0
    %96 = vmatpush1.bf16.msra.mxu0 0
    %97 = vmatprep.subr.bf16.mxu0 0
    %98 = vmatpush1.bf16.msra.mxu0 0
    %99 = vmatprep.subr.bf16.mxu0 0
    %100 = vmatpush1.bf16.msra.mxu0 0
    %101 = vmatprep.subr.bf16.mxu0 0
    %102 = vmatpush1.bf16.msra.mxu0 0
    %103 = vmatprep.subr.bf16.mxu0 0
    %104 = vmatpush1.bf16.msra.mxu0 0
    %105 = vmatprep.subr.bf16.mxu0 0
    %106 = vmatpush1.bf16.msra.mxu0 0
    %107 = vmatprep.subr.bf16.mxu0 0
    %108 = vmatpush1.bf16.msra.mxu0 %v87
    %109 = vmatprep.subr.bf16.mxu0 0
    %110 = vmatpush2.bf16.msra.mxu0 0
    %111 = vmatprep.subr.bf16.mxu0 0
    %112 = vmatpush2.bf16.msra.mxu0 0
    %113 = vmatprep.subr.bf16.mxu0 0
    %114 = vmatpush2.bf16.msra.mxu0 0
    %115 = vmatprep.subr.bf16.mxu0 0
    %116 = vmatpush2.bf16.msra.mxu0 0
    %117 = vmatprep.subr.bf16.mxu0 0
    %118 = vmatpush2.bf16.msra.mxu0 0
    %119 = vmatprep.subr.bf16.mxu0 0
    %120 = vmatpush2.bf16.msra.mxu0 0
    %121 = vmatprep.subr.bf16.mxu0 0
    %122 = vmatpush2.bf16.msra.mxu0 0
    %123 = vmatprep.subr.bf16.mxu0 0
    %124 = vmatpush2.bf16.msra.mxu0 0
    %125 = vmatprep.mubr.bf16.mxu0 0
    %126 = vmatmul.mubr.bf16.gmra.mxu0 %v91
    %v127 = vpop.f32.mrf.mxu0
    %v128 = vadd.f32 %v81, %v127
    %v129 = vpop.f32.mrf.mxu0
    %v130 = vpop.f32.mrf.mxu0
    %v131 = vpop.f32.mrf.mxu0
    %132 = vdwg.mxu0
    %v133 = vpack.c.bf16 %v128, %v128
    %v134 = vmax.bf16 %v133, 0
    %v135 = vld [vmem:[%s3] sm:$0xf]
    %v136 = vld [vmem:[%s3 + $0x4] sm:$0xf]
    %v137 = vld [vmem:[%s3 + $0x8] sm:$0xf]
    %v138 = vld [vmem:[%s3 + $0xc] sm:$0xf]
    %v139 = vld [vmem:[%s3 + $0x10] sm:$0xf]
    %v140 = vld [vmem:[%s3 + $0x14] sm:$0xf]
    %v141 = vld [vmem:[%s3 + $0x18] sm:$0xf]
    %v142 = vld [vmem:[%s3 + $0x1c] sm:$0xf]
    %v143 = vld [vmem:[%s4] sm:$0x1]
    %v145 = vlaneseq
    %v146 = vshrl.u32 %v145, 7
    %v147 = vsub.s32 0, %v146
    %v148 = vrot.slane %v143, %v147
    %v158 = vunpack.c.l.b16 %v135
    %v159 = vunpack.c.l.b16 %v136
    %v160 = vunpack.c.l.b16 %v137
    %v161 = vunpack.c.l.b16 %v138
    %v162 = vunpack.c.l.b16 %v139
    %v163 = vunpack.c.l.b16 %v140
    %v164 = vunpack.c.l.b16 %v141
    %v165 = vunpack.c.l.b16 %v142
    %v166 = vpack.c.b16 %v159, %v158
    %v167 = vpack.c.b16 %v161, %v160
    %v168 = vpack.c.b16 %v163, %v162
    %v169 = vpack.c.b16 %v165, %v164
    %vm174 = vcmask 523264
    %v176 = vsel %vm174, %v134, 0
    %178 = vmatprep.subr.bf16.mxu0 0
    %179 = vmatpush1.bf16.msra.mxu0 0
    %180 = vmatprep.subr.bf16.mxu0 0
    %181 = vmatpush1.bf16.msra.mxu0 0
    %182 = vmatprep.subr.bf16.mxu0 0
    %183 = vmatpush1.bf16.msra.mxu0 0
    %184 = vmatprep.subr.bf16.mxu0 0
    %185 = vmatpush1.bf16.msra.mxu0 0
    %186 = vmatprep.subr.bf16.mxu0 0
    %187 = vmatpush1.bf16.msra.mxu0 %v169
    %188 = vmatprep.subr.bf16.mxu0 0
    %189 = vmatpush1.bf16.msra.mxu0 %v168
    %190 = vmatprep.subr.bf16.mxu0 0
    %191 = vmatpush1.bf16.msra.mxu0 %v167
    %192 = vmatprep.subr.bf16.mxu0 0
    %193 = vmatpush1.bf16.msra.mxu0 %v166
    %194 = vmatprep.subr.bf16.mxu0 0
    %195 = vmatpush2.bf16.msra.mxu0 0
    %196 = vmatprep.subr.bf16.mxu0 0
    %197 = vmatpush2.bf16.msra.mxu0 0
    %198 = vmatprep.subr.bf16.mxu0 0
    %199 = vmatpush2.bf16.msra.mxu0 0
    %200 = vmatprep.subr.bf16.mxu0 0
    %201 = vmatpush2.bf16.msra.mxu0 0
    %202 = vmatprep.subr.bf16.mxu0 0
    %203 = vmatpush2.bf16.msra.mxu0 0
    %204 = vmatprep.subr.bf16.mxu0 0
    %205 = vmatpush2.bf16.msra.mxu0 0
    %206 = vmatprep.subr.bf16.mxu0 0
    %207 = vmatpush2.bf16.msra.mxu0 0
    %208 = vmatprep.subr.bf16.mxu0 0
    %209 = vmatpush2.bf16.msra.mxu0 0
    %210 = vmatprep.mubr.bf16.mxu0 0
    %211 = vmatmul.mubr.bf16.gmra.mxu0 %v176
    %v212 = vpop.f32.mrf.mxu0
    %v213 = vadd.f32 %v148, %v212
    %v214 = vpop.f32.mrf.mxu0
    %v215 = vpop.f32.mrf.mxu0
    %v216 = vpop.f32.mrf.mxu0
    %217 = vdwg.mxu0
    %v218 = vpack.c.bf16 %v213, %v213
    %v219 = vmax.bf16 %v218, 0
    %v220 = vld [vmem:[#allocation6] sm:$0xf]
    %v221 = vld [vmem:[#allocation6 + $0x4] sm:$0xf]
    %v222 = vld [vmem:[#allocation6 + $0x8] sm:$0xf]
    %v223 = vld [vmem:[#allocation6 + $0xc] sm:$0xf]
    %v224 = vld [vmem:[#allocation6 + $0x10] sm:$0xf]
    %v225 = vld [vmem:[#allocation6 + $0x14] sm:$0xf]
    %v226 = vld [vmem:[#allocation6 + $0x18] sm:$0xf]
    %v227 = vld [vmem:[#allocation6 + $0x1c] sm:$0xf]
    %v228 = vld [vmem:[%s6] sm:$0x1]
    %v230 = vlaneseq
    %v231 = vshrl.u32 %v230, 7
    %v232 = vsub.s32 0, %v231
    %v233 = vrot.slane %v228, %v232
    %v243 = vunpack.c.l.b16 %v220
    %v244 = vunpack.c.l.b16 %v221
    %v245 = vunpack.c.l.b16 %v222
    %v246 = vunpack.c.l.b16 %v223
    %v247 = vunpack.c.l.b16 %v224
    %v248 = vunpack.c.l.b16 %v225
    %v249 = vunpack.c.l.b16 %v226
    %v250 = vunpack.c.l.b16 %v227
    %v251 = vpack.c.b16 %v244, %v243
    %v252 = vpack.c.b16 %v246, %v245
    %v253 = vpack.c.b16 %v248, %v247
    %v254 = vpack.c.b16 %v250, %v249
    %v260 = vsel %vm174, %v219, 0
    %262 = vmatprep.subr.bf16.mxu0 0
    %263 = vmatpush1.bf16.msra.mxu0 0
    %264 = vmatprep.subr.bf16.mxu0 0
    %265 = vmatpush1.bf16.msra.mxu0 0
    %266 = vmatprep.subr.bf16.mxu0 0
    %267 = vmatpush1.bf16.msra.mxu0 0
    %268 = vmatprep.subr.bf16.mxu0 0
    %269 = vmatpush1.bf16.msra.mxu0 0
    %270 = vmatprep.subr.bf16.mxu0 0
    %271 = vmatpush1.bf16.msra.mxu0 %v254
    %272 = vmatprep.subr.bf16.mxu0 0
    %273 = vmatpush1.bf16.msra.mxu0 %v253
    %274 = vmatprep.subr.bf16.mxu0 0
    %275 = vmatpush1.bf16.msra.mxu0 %v252
    %276 = vmatprep.subr.bf16.mxu0 0
    %277 = vmatpush1.bf16.msra.mxu0 %v251
    %278 = vmatprep.subr.bf16.mxu0 0
    %279 = vmatpush2.bf16.msra.mxu0 0
    %280 = vmatprep.subr.bf16.mxu0 0
    %281 = vmatpush2.bf16.msra.mxu0 0
    %282 = vmatprep.subr.bf16.mxu0 0
    %283 = vmatpush2.bf16.msra.mxu0 0
    %284 = vmatprep.subr.bf16.mxu0 0
    %285 = vmatpush2.bf16.msra.mxu0 0
    %286 = vmatprep.subr.bf16.mxu0 0
    %287 = vmatpush2.bf16.msra.mxu0 0
    %288 = vmatprep.subr.bf16.mxu0 0
    %289 = vmatpush2.bf16.msra.mxu0 0
    %290 = vmatprep.subr.bf16.mxu0 0
    %291 = vmatpush2.bf16.msra.mxu0 0
    %292 = vmatprep.subr.bf16.mxu0 0
    %293 = vmatpush2.bf16.msra.mxu0 0
    %294 = vmatprep.mubr.bf16.mxu0 0
    %295 = vmatmul.mubr.bf16.gmra.mxu0 %v260
    %v296 = vpop.f32.mrf.mxu0
    %v297 = vadd.f32 %v233, %v296
    %v298 = vpop.f32.mrf.mxu0
    %v299 = vpop.f32.mrf.mxu0
    %v300 = vpop.f32.mrf.mxu0
    %301 = vdwg.mxu0
    %v302 = vpack.c.bf16 %v297, %v297
    %v303 = vmax.bf16 %v302, 0
    %v304 = vld [vmem:[%s7] sm:$0xf]
    %v305 = vld [vmem:[%s7 + $0x4] sm:$0xf]
    %v306 = vld [vmem:[%s7 + $0x8] sm:$0xf]
    %v307 = vld [vmem:[%s7 + $0xc] sm:$0xf]
    %v308 = vld [vmem:[%s7 + $0x10] sm:$0xf]
    %v309 = vld [vmem:[%s7 + $0x14] sm:$0xf]
    %v310 = vld [vmem:[%s7 + $0x18] sm:$0xf]
    %v311 = vld [vmem:[%s7 + $0x1c] sm:$0xf]
    %v312 = vld [vmem:[%s8] sm:$0x1]
    %v314 = vlaneseq
    %v315 = vshrl.u32 %v314, 7
    %v316 = vsub.s32 0, %v315
    %v317 = vrot.slane %v312, %v316
    %v327 = vunpack.c.l.b16 %v304
    %v328 = vunpack.c.l.b16 %v305
    %v329 = vunpack.c.l.b16 %v306
    %v330 = vunpack.c.l.b16 %v307
    %v331 = vunpack.c.l.b16 %v308
    %v332 = vunpack.c.l.b16 %v309
    %v333 = vunpack.c.l.b16 %v310
    %v334 = vunpack.c.l.b16 %v311
    %v335 = vpack.c.b16 %v328, %v327
    %v336 = vpack.c.b16 %v330, %v329
    %v337 = vpack.c.b16 %v332, %v331
    %v338 = vpack.c.b16 %v334, %v333
    %v344 = vsel %vm174, %v303, 0
    %346 = vmatprep.subr.bf16.mxu0 0
    %347 = vmatpush1.bf16.msra.mxu0 0
    %348 = vmatprep.subr.bf16.mxu0 0
    %349 = vmatpush1.bf16.msra.mxu0 0
    %350 = vmatprep.subr.bf16.mxu0 0
    %351 = vmatpush1.bf16.msra.mxu0 0
    %352 = vmatprep.subr.bf16.mxu0 0
    %353 = vmatpush1.bf16.msra.mxu0 0
    %354 = vmatprep.subr.bf16.mxu0 0
    %355 = vmatpush1.bf16.msra.mxu0 %v338
    %356 = vmatprep.subr.bf16.mxu0 0
    %357 = vmatpush1.bf16.msra.mxu0 %v337
    %358 = vmatprep.subr.bf16.mxu0 0
    %359 = vmatpush1.bf16.msra.mxu0 %v336
    %360 = vmatprep.subr.bf16.mxu0 0
    %361 = vmatpush1.bf16.msra.mxu0 %v335
    %362 = vmatprep.subr.bf16.mxu0 0
    %363 = vmatpush2.bf16.msra.mxu0 0
    %364 = vmatprep.subr.bf16.mxu0 0
    %365 = vmatpush2.bf16.msra.mxu0 0
    %366 = vmatprep.subr.bf16.mxu0 0
    %367 = vmatpush2.bf16.msra.mxu0 0
    %368 = vmatprep.subr.bf16.mxu0 0
    %369 = vmatpush2.bf16.msra.mxu0 0
    %370 = vmatprep.subr.bf16.mxu0 0
    %371 = vmatpush2.bf16.msra.mxu0 0
    %372 = vmatprep.subr.bf16.mxu0 0
    %373 = vmatpush2.bf16.msra.mxu0 0
    %374 = vmatprep.subr.bf16.mxu0 0
    %375 = vmatpush2.bf16.msra.mxu0 0
    %376 = vmatprep.subr.bf16.mxu0 0
    %377 = vmatpush2.bf16.msra.mxu0 0
    %378 = vmatprep.mubr.bf16.mxu0 0
    %379 = vmatmul.mubr.bf16.gmra.mxu0 %v344
    %v380 = vpop.f32.mrf.mxu0
    %v381 = vadd.f32 %v317, %v380
    %v382 = vpop.f32.mrf.mxu0
    %v383 = vpop.f32.mrf.mxu0
    %v384 = vpop.f32.mrf.mxu0
    %385 = vdwg.mxu0
    %vm386 = vcmask 31744
    %387 = vst.msk [vmem:[%s9] sm:$0xff] %vm386, %v381
    // Predicated region
    $region50: #{tpu_custom_call.1} parent=1 // pred_check
      _
    $region51: #{tpu_custom_call.1} parent=1 // pred_check_branch
      %389 = sbr.rel (0) target = $region53
    $region52: #{tpu_custom_call.1} parent=1 // pred_region
      _
    $region53: #{tpu_custom_call.1} parent=1 // pred_fallthru
      _
    // Predicated region
    $region54: #{tpu_custom_call.1} parent=1 // pred_check
      _
    $region55: #{tpu_custom_call.1} parent=1 // pred_check_branch
      %391 = sbr.rel (0) target = $region57
    $region56: #{tpu_custom_call.1} parent=1 // pred_region
      _
    $region57: #{tpu_custom_call.1} parent=1 // pred_fallthru
      _
    %392 = vsyncpa [#allocation3], 1
    %393 = vsyncpa [#allocation5], 1

</llo_original>
